<compile_context>
chip_gen: v5e
topology: v5e:2x2
jax: 0.10.0
libtpu: 0.0.40
codegen_flags: <defaults>
</compile_context>

<pallas_src>
import functools

import jax
import jax.numpy as jnp
import numpy as np
from jax.experimental import pallas as pl
from jax.experimental.pallas import tpu as pltpu


def _round_up(a, b):
    return ((a + b - 1) // b) * b


def _vmem_budget_and_limit():
    """Per-generation VMEM sizing; conservative 64 MiB fallback if query fails."""
    cap = 64 * 1024 * 1024
    try:
        cap = int(getattr(pltpu.get_tpu_info(), "vmem_capacity_bytes", cap))
    except Exception:
        pass
    budget = (cap * 70) // 100
    limit = min((cap * 85) // 100, 128 * 1024 * 1024)
    return budget, limit


def _choose_ic(intermediate):
    """Pick an intermediate-dim chunk (multiple of 128, <= 512) and the padded I."""
    ip = _round_up(intermediate, 128)
    if ip <= 512:
        return ip, ip
    for c in (512, 384, 256, 128):
        if ip % c == 0:
            return c, ip
    return 128, ip  # unreachable: 128 always divides ip


def _vmem_estimate(tm, C, ic, E, out_bytes, acc_in_output):
    """Rough per-pipeline VMEM footprint for the chosen tiling (double-buffered)."""
    w12 = C * (2 * ic) * 2                      # fused fc weights, bf16
    wp = ic * C * 2                             # proj weight chunk, bf16
    b12 = _round_up(2 * ic, 128) * 4            # fused fc bias, f32
    bp = _round_up(C, 128) * 4                  # proj bias, f32
    xb = tm * C * 2                             # token block, bf16
    ob = tm * C * out_bytes                     # output block
    wt = tm * max(_round_up(E, 128), 128) * 4   # router-weight block (lane padded)
    total = 2 * (w12 + wp + b12 + bp + xb + ob + wt)
    total += tm * 128 * 4                       # (tm, 1) router-column scratch
    if not acc_in_output:
        total += tm * C * 4                     # f32 accumulator scratch
    return total


def _make_moe_kernel(acc_in_output):
    """Grid = (token_tiles, expert_slot, i_chunks); slot/chunk axes are reductions."""

    def kernel(sched_ref, act_ref, x_ref, wtok_ref, w12_ref, b12_ref,
               wp_ref, bp_ref, o_ref, *scratch):
        if acc_in_output:
            acc_ref = o_ref
            wcol_ref = scratch[0]
        else:
            acc_ref, wcol_ref = scratch

        i = pl.program_id(0)
        e = pl.program_id(1)
        c = pl.program_id(2)
        n_e = pl.num_programs(1)
        n_c = pl.num_programs(2)
        slot = i * n_e + e

        @pl.when(jnp.logical_and(e == 0, c == 0))
        def _():
            acc_ref[...] = jnp.zeros_like(acc_ref)

        # Inactive slots: compute skipped here AND weight DMA elided by the
        # schedule-driven index_maps (they repeat the previous block index).
        @pl.when(act_ref[slot] != 0)
        def _():
            # Per-token router weight for this expert, hoisted out of the chunk loop.
            @pl.when(c == 0)
            def _():
                eid = sched_ref[slot]
                col = jax.lax.broadcasted_iota(jnp.int32, wtok_ref.shape, 1)
                wcol_ref[...] = jnp.sum(
                    jnp.where(col == eid, wtok_ref[...], 0.0),
                    axis=1, keepdims=True)                             # (tm, 1) f32

            x = x_ref[...]                                             # (tm, C) bf16
            # Fused fc_1|fc_2 chunk: one MXU call, split at the 128-aligned midpoint.
            h12 = jnp.dot(x, w12_ref[0, 0],
                          preferred_element_type=jnp.float32) + b12_ref[0, 0]
            half = h12.shape[1] // 2
            h1 = h12[:, :half]
            h2 = h12[:, half:]
            h = (h1 * jax.nn.sigmoid(h1)) * h2                         # silu(fc1)*fc2
            out = jnp.dot(h.astype(jnp.bfloat16), wp_ref[0, 0],
                          preferred_element_type=jnp.float32)          # (tm, C) f32
            # proj bias only once per expert (first intermediate chunk).
            bias_gate = jnp.where(c == 0, 1.0, 0.0).astype(jnp.float32)
            acc_ref[...] += wcol_ref[...] * (out + bias_gate * bp_ref[0])

        if not acc_in_output:
            @pl.when(jnp.logical_and(e == n_e - 1, c == n_c - 1))
            def _():
                o_ref[...] = acc_ref[...].astype(o_ref.dtype)

    return kernel


def llama_moe_forward(x, params, n_expert_per_token, tm=None):
    """x: (B, T, C).  params hold stacked expert weights (see init_params)."""
    B, T, C = x.shape
    N = B * T
    xf = x.reshape(N, C)

    gate_w = params["gate_w"]                    # (C, E)
    E = gate_w.shape[1]
    I = params["w1"].shape[-1]

    # --- routing (tiny, plain-JAX glue) --------------------------------------
    router = xf.astype(jnp.float32) @ gate_w.astype(jnp.float32)         # (N, E)
    probs, indices = jax.lax.top_k(router, n_expert_per_token)           # (N, k)
    probs = jax.nn.softmax(probs, axis=-1)
    one_hot = jax.nn.one_hot(indices, E, dtype=probs.dtype)              # (N, k, E)
    w_tok = jnp.einsum("nk,nke->ne", probs, one_hot)                     # (N, E) f32

    # --- tile sizing ----------------------------------------------------------
    budget, vmem_limit = _vmem_budget_and_limit()
    ic, Ip = _choose_ic(I)
    out_bytes = jnp.dtype(x.dtype).itemsize
    acc_in_output = (x.dtype == jnp.float32)     # f32 output: accumulate in o_ref
    if tm is None:
        tm = 512                                  # past the v5e/v6e roofline knee
    tm = max(8, min(tm, _round_up(N, 8)))
    tm = (tm // 8) * 8
    # Shrink the intermediate chunk before the token tile: arithmetic intensity of
    # the expert loop is ~tm FLOP per weight byte, independent of ic.
    while _vmem_estimate(tm, C, ic, E, out_bytes, acc_in_output) > budget:
        shrunk = False
        for cand in (384, 256, 128):
            if cand < ic and Ip % cand == 0:
                ic = cand
                shrunk = True
                break
        if not shrunk:
            if tm > 128:
                tm //= 2
            else:
                break
    n_ic = Ip // ic
    Np = _round_up(N, tm)
    n_tiles = Np // tm

    # Pad the token axis so there is no remainder tile; padded rows get zero weight.
    if Np != N:
        xf = jnp.pad(xf, ((0, Np - N), (0, 0)))
        w_tok = jnp.pad(w_tok, ((0, Np - N), (0, 0)))
    xf_bf16 = xf.astype(jnp.bfloat16)            # cast once; MXU sees bf16 anyway

    # --- per-tile compacted expert schedule (scalar-prefetched, 1D SMEM) -----
    # Note: (w_tok > 0) may drop an expert whose softmax prob underflowed to exactly
    # 0 — harmless since its contribution would be 0.
    used = (w_tok.reshape(n_tiles, tm, E) > 0).any(axis=1)               # (T, E) bool
    idx = jnp.arange(E, dtype=jnp.int32)
    key = jnp.where(used, idx[None, :], idx[None, :] + E)
    order = jnp.argsort(key, axis=-1).astype(jnp.int32)                  # used ids 1st
    n_used = used.sum(axis=-1, keepdims=True).astype(jnp.int32)
    slot_id = jnp.arange(E, dtype=jnp.int32)[None, :]
    clamped = jnp.minimum(slot_id, jnp.maximum(n_used, 1) - 1)
    sched = jnp.take_along_axis(order, clamped, axis=-1).reshape(-1)     # (T*E,)
    active = (slot_id < n_used).astype(jnp.int32).reshape(-1)            # (T*E,)

    # --- weight packing: pad I, chunk, fuse fc_1|fc_2, cast to bf16 ----------
    def pad_i(w, axis):
        if Ip == I:
            return w
        pad = [(0, 0)] * w.ndim
        pad[axis] = (0, Ip - I)
        return jnp.pad(w, pad)

    w1 = pad_i(params["w1"], 2).reshape(E, C, n_ic, ic).transpose(0, 2, 1, 3)
    w2 = pad_i(params["w2"], 2).reshape(E, C, n_ic, ic).transpose(0, 2, 1, 3)
    w12 = jnp.concatenate([w1, w2], axis=-1).astype(jnp.bfloat16)        # (E,n,C,2ic)
    b1 = pad_i(params["b1"], 2).reshape(E, 1, n_ic, ic).transpose(0, 2, 1, 3)
    b2 = pad_i(params["b2"], 2).reshape(E, 1, n_ic, ic).transpose(0, 2, 1, 3)
    b12 = jnp.concatenate([b1, b2], axis=-1).astype(jnp.float32)         # (E,n,1,2ic)
    wpc = pad_i(params["wp"], 1).reshape(E, n_ic, ic, C).astype(jnp.bfloat16)
    bpf = params["bp"].astype(jnp.float32)                               # (E, 1, C)

    # --- index maps (schedule-driven; inactive slots repeat the previous index,
    #     which makes Pallas elide the weight re-fetch) ------------------------
    last_c = n_ic - 1

    def w_chunk_idx(i, e, c, sched_ref, act_ref):
        s = i * E + e
        a = act_ref[s]
        return (sched_ref[s], c * a + last_c * (1 - a), 0, 0)

    def bp_idx(i, e, c, sched_ref, act_ref):
        return (sched_ref[i * E + e], 0, 0)

    def tok_idx(i, e, c, sched_ref, act_ref):
        return (i, 0)

    kernel = _make_moe_kernel(acc_in_output)
    scratch_shapes = []
    if not acc_in_output:
        scratch_shapes.append(pltpu.VMEM((tm, C), jnp.float32))
    scratch_shapes.append(pltpu.VMEM((tm, 1), jnp.float32))

    y = pl.pallas_call(
        kernel,
        out_shape=jax.ShapeDtypeStruct((Np, C), x.dtype),
        grid_spec=pltpu.PrefetchScalarGridSpec(
            num_scalar_prefetch=2,
            grid=(n_tiles, E, n_ic),
            in_specs=[
                pl.BlockSpec((tm, C), tok_idx),                   # x tokens (bf16)
                pl.BlockSpec((tm, E), tok_idx),                   # router wts (f32)
                pl.BlockSpec((1, 1, C, 2 * ic), w_chunk_idx),     # fused fc_1|fc_2 w
                pl.BlockSpec((1, 1, 1, 2 * ic), w_chunk_idx),     # fused fc_1|fc_2 b
                pl.BlockSpec((1, 1, ic, C), w_chunk_idx),         # proj w chunk
                pl.BlockSpec((1, 1, C), bp_idx),                  # proj b
            ],
            out_specs=pl.BlockSpec((tm, C), tok_idx),
            scratch_shapes=scratch_shapes,
        ),
        compiler_params=pltpu.CompilerParams(
            dimension_semantics=("parallel", "arbitrary", "arbitrary"),
            vmem_limit_bytes=vmem_limit),
    )(sched, active, xf_bf16, w_tok, w12, b12, wpc, bpf)
    return y[:N].reshape(B, T, C)


def ref_forward(x, params, n_expert_per_token):
    """Pure-JAX reference replicating the PyTorch forward semantics (f32)."""
    B, T, C = x.shape
    xf = x.reshape(-1, C)
    E = params["gate_w"].shape[1]
    router = xf @ params["gate_w"]
    probs, indices = jax.lax.top_k(router, n_expert_per_token)
    probs = jax.nn.softmax(probs.astype(jnp.float32), axis=-1).astype(x.dtype)
    one_hot = jax.nn.one_hot(indices, E, dtype=probs.dtype)
    w_tok = jnp.einsum("nk,nke->ne", probs, one_hot)
    y = jnp.zeros_like(xf)
    for e in range(E):
        h1 = xf @ params["w1"][e] + params["b1"][e]
        h2 = xf @ params["w2"][e] + params["b2"][e]
        h = jax.nn.silu(h1) * h2
        out = h @ params["wp"][e] + params["bp"][e]
        y = y + w_tok[:, e:e + 1] * out
    return y.reshape(B, T, C)


def init_params(key, n_embd, intermediate_size, n_expert, dtype=jnp.float32):
    """Deterministic synthetic parameters.

    PyTorch nn.Linear stores weight as (out, in); here weights are stored
    pre-transposed as (in, out) so the kernel computes x @ W (+ b).
    """
    ks = jax.random.split(key, 7)

    def u(k, shape, fan_in):
        bound = 1.0 / np.sqrt(fan_in)
        return jax.random.uniform(k, shape, dtype, -bound, bound)

    C, I, E = n_embd, intermediate_size, n_expert
    return {
        "gate_w": u(ks[0], (C, E), C),
        "w1": u(ks[1], (E, C, I), C),
        "b1": u(ks[2], (E, 1, I), C),
        "w2": u(ks[3], (E, C, I), C),
        "b2": u(ks[4], (E, 1, I), C),
        "wp": u(ks[5], (E, I, C), I),
        "bp": u(ks[6], (E, 1, C), I),
    }


if __name__ == "__main__":
    # Small config: n_embd=32, intermediate_size=64, n_expert=4,
    # n_expert_per_token=2, bias=True; B=2, T=16.
    B, T, C = 2, 16, 32
    I, E, K = 64, 4, 2

    key = jax.random.PRNGKey(0)
    kx, kp = jax.random.split(key)
    x = jax.random.normal(kx, (B, T, C), dtype=jnp.float32)
    params = init_params(kp, C, I, E)

    moe = jax.jit(functools.partial(llama_moe_forward, n_expert_per_token=K))
    y = moe(x, params)
    y = jax.block_until_ready(y)

    # Reference is pure f32; kernel runs the matmuls in bf16 (f32 accumulation),
    # so the comparison tolerance reflects bf16 input rounding.
    y_ref = ref_forward(x, params, K)
    np.testing.assert_allclose(np.asarray(y), np.asarray(y_ref),
                               rtol=3e-2, atol=3e-2)
    print("KERNEL_OK")
</pallas_src>

<mosaic_0001>
module attributes {stable_mosaic.version = 11 : i64} {
  func.func @kernel(%arg0: i32, %arg1: i32, %arg2: i32, %arg3: memref<4xi32, #tpu.memory_space<smem>>, %arg4: memref<4xi32, #tpu.memory_space<smem>>, %arg5: memref<32x32xbf16, #tpu.memory_space<vmem>>, %arg6: memref<32x4xf32, #tpu.memory_space<vmem>>, %arg7: memref<1x1x32x256xbf16, #tpu.memory_space<vmem>>, %arg8: memref<1x1x1x256xf32, #tpu.memory_space<vmem>>, %arg9: memref<1x1x128x32xbf16, #tpu.memory_space<vmem>>, %arg10: memref<1x1x32xf32, #tpu.memory_space<vmem>>, %arg11: memref<32x32xf32, #tpu.memory_space<vmem>>, %arg12: memref<32x1xf32, #tpu.memory_space<vmem>>) attributes {dimension_semantics = [#tpu.dimension_semantics<parallel>, #tpu.dimension_semantics<arbitrary>, #tpu.dimension_semantics<arbitrary>], iteration_bounds = array<i64: 1, 4, 1>, scalar_prefetch = 2 : i64, scratch_operands = 1 : i64, tpu.core_type = #tpu.core_type<tc>, window_params = [{transform_indices = @transform_0, window_bounds = array<i64: 32, 32>}, {transform_indices = @transform_1, window_bounds = array<i64: 32, 4>}, {transform_indices = @transform_2, window_bounds = array<i64: 1, 1, 32, 256>}, {transform_indices = @transform_3, window_bounds = array<i64: 1, 1, 1, 256>}, {transform_indices = @transform_4, window_bounds = array<i64: 1, 1, 128, 32>}, {transform_indices = @transform_5, window_bounds = array<i64: 1, 1, 32>}, {transform_indices = @transform_6, window_bounds = array<i64: 32, 32>}]} {
    %c4_i32 = arith.constant 4 : i32
    %0 = arith.muli %arg0, %c4_i32 : i32
    %1 = arith.addi %0, %arg1 : i32
    %c0_i32 = arith.constant 0 : i32
    %2 = arith.cmpi eq, %arg1, %c0_i32 : i32
    %c0_i32_0 = arith.constant 0 : i32
    %3 = arith.cmpi eq, %arg2, %c0_i32_0 : i32
    %4 = arith.andi %2, %3 : i1
    %5 = arith.extui %4 : i1 to i32
    %c0_i32_1 = arith.constant 0 : i32
    %6 = arith.cmpi ne, %5, %c0_i32_1 : i32
    scf.if %6 {
      %cst = arith.constant 0.000000e+00 : f32
      %12 = vector.broadcast %cst : f32 to vector<32x32xf32>
      %c0 = arith.constant 0 : index
      %c0_4 = arith.constant 0 : index
      %13 = vector.load %arg11[%c0, %c0_4] : memref<32x32xf32, #tpu.memory_space<vmem>>, vector<32x32xf32>
      tpu.vector_store %arg11[%c0, %c0_4], %12 {strides = array<i32>} : memref<32x32xf32, #tpu.memory_space<vmem>>, vector<32x32xf32>,
    } else {
    }
    %7 = arith.index_cast %1 : i32 to index
    %8 = memref.load %arg4[%7] : memref<4xi32, #tpu.memory_space<smem>>
    %c0_i32_2 = arith.constant 0 : i32
    %9 = arith.cmpi ne, %8, %c0_i32_2 : i32
    %10 = arith.extui %9 : i1 to i32
    %c0_i32_3 = arith.constant 0 : i32
    %11 = arith.cmpi ne, %10, %c0_i32_3 : i32
    scf.if %11 {
      %c0_i32_4 = arith.constant 0 : i32
      %12 = arith.cmpi eq, %arg2, %c0_i32_4 : i32
      %13 = arith.extui %12 : i1 to i32
      %c0_i32_5 = arith.constant 0 : i32
      %14 = arith.cmpi ne, %13, %c0_i32_5 : i32
      scf.if %14 {
        %50 = arith.index_cast %1 : i32 to index
        %51 = memref.load %arg3[%50] : memref<4xi32, #tpu.memory_space<smem>>
        %52 = tpu.iota {dimensions = array<i32: 1>} : vector<32x4xi32>
        %53 = vector.broadcast %51 : i32 to vector<32x4xi32>
        %54 = arith.cmpi eq, %52, %53 : vector<32x4xi32>
        %c0_33 = arith.constant 0 : index
        %c0_34 = arith.constant 0 : index
        %55 = vector.load %arg6[%c0_33, %c0_34] : memref<32x4xf32, #tpu.memory_space<vmem>>, vector<32x4xf32>
        %cst_35 = arith.constant 0.000000e+00 : f32
        %56 = vector.broadcast %cst_35 : f32 to vector<32x4xf32>
        %57 = arith.select %54, %55, %56 : vector<32x4xi1>, vector<32x4xf32>
        %cst_36 = arith.constant dense<0.000000e+00> : vector<32xf32>
        %58 = vector.multi_reduction <add>, %57, %cst_36 [1] : vector<32x4xf32> to vector<32xf32>
        %59 = vector.shape_cast %58 : vector<32xf32> to vector<32x1xf32>
        %c0_37 = arith.constant 0 : index
        %c0_38 = arith.constant 0 : index
        %60 = vector.load %arg12[%c0_37, %c0_38] : memref<32x1xf32, #tpu.memory_space<vmem>>, vector<32x1xf32>
        tpu.vector_store %arg12[%c0_37, %c0_38], %59 {strides = array<i32>} : memref<32x1xf32, #tpu.memory_space<vmem>>, vector<32x1xf32>,
      } else {
      }
      %c0 = arith.constant 0 : index
      %c0_6 = arith.constant 0 : index
      %15 = vector.load %arg5[%c0, %c0_6] : memref<32x32xbf16, #tpu.memory_space<vmem>>, vector<32x32xbf16>
      %c0_7 = arith.constant 0 : index
      %c0_8 = arith.constant 0 : index
      %c0_9 = arith.constant 0 : index
      %c0_10 = arith.constant 0 : index
      %16 = vector.load %arg7[%c0_7, %c0_8, %c0_9, %c0_10] : memref<1x1x32x256xbf16, #tpu.memory_space<vmem>>, vector<1x1x32x256xbf16>
      %17 = vector.shape_cast %16 : vector<1x1x32x256xbf16> to vector<32x256xbf16>
      %cst = arith.constant dense<0.000000e+00> : vector<32x256xf32>
      %18 = tpu.matmul %15, %17, %cst {dimension_numbers = #tpu.dot_dimension_numbers<[1], [0], [0], [1], [0, 0, 1, 1], [], []>} : vector<32x32xbf16>, vector<32x256xbf16>, vector<32x256xf32> -> vector<32x256xf32>
      %c0_11 = arith.constant 0 : index
      %c0_12 = arith.constant 0 : index
      %c0_13 = arith.constant 0 : index
      %c0_14 = arith.constant 0 : index
      %19 = vector.load %arg8[%c0_11, %c0_12, %c0_13, %c0_14] : memref<1x1x1x256xf32, #tpu.memory_space<vmem>>, vector<1x1x1x256xf32>
      %20 = vector.shape_cast %19 : vector<1x1x1x256xf32> to vector<1x256xf32>
      %21 = vector.broadcast %20 : vector<1x256xf32> to vector<32x256xf32>
      %22 = arith.addf %18, %21 : vector<32x256xf32>
      %23 = vector.extract_strided_slice %22 {offsets = [0, 0], sizes = [32, 128], strides = [1, 1]} : vector<32x256xf32> to vector<32x128xf32>
      %24 = vector.extract_strided_slice %22 {offsets = [0, 128], sizes = [32, 128], strides = [1, 1]} : vector<32x256xf32> to vector<32x128xf32>
      %25 = arith.negf %23 : vector<32x128xf32>
      %26 = math.exp %25 : vector<32x128xf32>
      %cst_15 = arith.constant 1.000000e+00 : f32
      %27 = vector.broadcast %cst_15 : f32 to vector<32x128xf32>
      %28 = arith.addf %27, %26 : vector<32x128xf32>
      %29 = arith.divf %27, %28 : vector<32x128xf32>
      %30 = arith.mulf %23, %29 : vector<32x128xf32>
      %31 = arith.mulf %30, %24 : vector<32x128xf32>
      %32 = arith.truncf %31 : vector<32x128xf32> to vector<32x128xbf16>
      %c0_16 = arith.constant 0 : index
      %c0_17 = arith.constant 0 : index
      %c0_18 = arith.constant 0 : index
      %c0_19 = arith.constant 0 : index
      %33 = vector.load %arg9[%c0_16, %c0_17, %c0_18, %c0_19] : memref<1x1x128x32xbf16, #tpu.memory_space<vmem>>, vector<1x1x128x32xbf16>
      %34 = vector.shape_cast %33 : vector<1x1x128x32xbf16> to vector<128x32xbf16>
      %cst_20 = arith.constant dense<0.000000e+00> : vector<32x32xf32>
      %35 = tpu.matmul %32, %34, %cst_20 {dimension_numbers = #tpu.dot_dimension_numbers<[1], [0], [0], [1], [0, 0, 1, 1], [], []>} : vector<32x128xbf16>, vector<128x32xbf16>, vector<32x32xf32> -> vector<32x32xf32>
      %c0_i32_21 = arith.constant 0 : i32
      %36 = arith.cmpi eq, %arg2, %c0_i32_21 : i32
      %cst_22 = arith.constant 1.000000e+00 : f32
      %cst_23 = arith.constant 0.000000e+00 : f32
      %37 = arith.select %36, %cst_22, %cst_23 : f32
      %c0_24 = arith.constant 0 : index
      %c0_25 = arith.constant 0 : index
      %38 = vector.load %arg11[%c0_24, %c0_25] : memref<32x32xf32, #tpu.memory_space<vmem>>, vector<32x32xf32>
      %c0_26 = arith.constant 0 : index
      %c0_27 = arith.constant 0 : index
      %39 = vector.load %arg12[%c0_26, %c0_27] : memref<32x1xf32, #tpu.memory_space<vmem>>, vector<32x1xf32>
      %c0_28 = arith.constant 0 : index
      %c0_29 = arith.constant 0 : index
      %c0_30 = arith.constant 0 : index
      %40 = vector.load %arg10[%c0_28, %c0_29, %c0_30] : memref<1x1x32xf32, #tpu.memory_space<vmem>>, vector<1x1x32xf32>
      %41 = vector.shape_cast %40 : vector<1x1x32xf32> to vector<1x32xf32>
      %42 = vector.broadcast %37 : f32 to vector<1x32xf32>
      %43 = arith.mulf %42, %41 : vector<1x32xf32>
      %44 = vector.broadcast %43 : vector<1x32xf32> to vector<32x32xf32>
      %45 = arith.addf %35, %44 : vector<32x32xf32>
      %46 = vector.broadcast %39 : vector<32x1xf32> to vector<32x32xf32>
      %47 = arith.mulf %46, %45 : vector<32x32xf32>
      %48 = arith.addf %38, %47 : vector<32x32xf32>
      %c0_31 = arith.constant 0 : index
      %c0_32 = arith.constant 0 : index
      %49 = vector.load %arg11[%c0_31, %c0_32] : memref<32x32xf32, #tpu.memory_space<vmem>>, vector<32x32xf32>
      tpu.vector_store %arg11[%c0_31, %c0_32], %48 {strides = array<i32>} : memref<32x32xf32, #tpu.memory_space<vmem>>, vector<32x32xf32>,
    } else {
    }
    return
  }
  func.func @transform_0(%arg0: i32, %arg1: i32, %arg2: i32, %arg3: memref<4xi32, #tpu.memory_space<smem>>, %arg4: memref<4xi32, #tpu.memory_space<smem>>) -> (i32, i32) {
    %c0_i32 = arith.constant 0 : i32
    %c0_i32_0 = arith.constant 0 : i32
    return %arg0, %c0_i32 : i32, i32
  }
  func.func @transform_1(%arg0: i32, %arg1: i32, %arg2: i32, %arg3: memref<4xi32, #tpu.memory_space<smem>>, %arg4: memref<4xi32, #tpu.memory_space<smem>>) -> (i32, i32) {
    %c0_i32 = arith.constant 0 : i32
    %c0_i32_0 = arith.constant 0 : i32
    return %arg0, %c0_i32 : i32, i32
  }
  func.func @transform_2(%arg0: i32, %arg1: i32, %arg2: i32, %arg3: memref<4xi32, #tpu.memory_space<smem>>, %arg4: memref<4xi32, #tpu.memory_space<smem>>) -> (i32, i32, i32, i32) {
    %c4_i32 = arith.constant 4 : i32
    %0 = arith.muli %arg0, %c4_i32 : i32
    %1 = arith.addi %0, %arg1 : i32
    %2 = arith.index_cast %1 : i32 to index
    %3 = memref.load %arg4[%2] : memref<4xi32, #tpu.memory_space<smem>>
    %4 = arith.index_cast %1 : i32 to index
    %5 = memref.load %arg3[%4] : memref<4xi32, #tpu.memory_space<smem>>
    %6 = arith.muli %arg2, %3 : i32
    %c1_i32 = arith.constant 1 : i32
    %7 = arith.subi %c1_i32, %3 : i32
    %c0_i32 = arith.constant 0 : i32
    %8 = arith.muli %c0_i32, %7 : i32
    %9 = arith.addi %6, %8 : i32
    %c0_i32_0 = arith.constant 0 : i32
    %c0_i32_1 = arith.constant 0 : i32
    %c0_i32_2 = arith.constant 0 : i32
    return %5, %9, %c0_i32_0, %c0_i32_1 : i32, i32, i32, i32
  }
  func.func @transform_3(%arg0: i32, %arg1: i32, %arg2: i32, %arg3: memref<4xi32, #tpu.memory_space<smem>>, %arg4: memref<4xi32, #tpu.memory_space<smem>>) -> (i32, i32, i32, i32) {
    %c4_i32 = arith.constant 4 : i32
    %0 = arith.muli %arg0, %c4_i32 : i32
    %1 = arith.addi %0, %arg1 : i32
    %2 = arith.index_cast %1 : i32 to index
    %3 = memref.load %arg4[%2] : memref<4xi32, #tpu.memory_space<smem>>
    %4 = arith.index_cast %1 : i32 to index
    %5 = memref.load %arg3[%4] : memref<4xi32, #tpu.memory_space<smem>>
    %6 = arith.muli %arg2, %3 : i32
    %c1_i32 = arith.constant 1 : i32
    %7 = arith.subi %c1_i32, %3 : i32
    %c0_i32 = arith.constant 0 : i32
    %8 = arith.muli %c0_i32, %7 : i32
    %9 = arith.addi %6, %8 : i32
    %c0_i32_0 = arith.constant 0 : i32
    %c0_i32_1 = arith.constant 0 : i32
    %c0_i32_2 = arith.constant 0 : i32
    return %5, %9, %c0_i32_0, %c0_i32_1 : i32, i32, i32, i32
  }
  func.func @transform_4(%arg0: i32, %arg1: i32, %arg2: i32, %arg3: memref<4xi32, #tpu.memory_space<smem>>, %arg4: memref<4xi32, #tpu.memory_space<smem>>) -> (i32, i32, i32, i32) {
    %c4_i32 = arith.constant 4 : i32
    %0 = arith.muli %arg0, %c4_i32 : i32
    %1 = arith.addi %0, %arg1 : i32
    %2 = arith.index_cast %1 : i32 to index
    %3 = memref.load %arg4[%2] : memref<4xi32, #tpu.memory_space<smem>>
    %4 = arith.index_cast %1 : i32 to index
    %5 = memref.load %arg3[%4] : memref<4xi32, #tpu.memory_space<smem>>
    %6 = arith.muli %arg2, %3 : i32
    %c1_i32 = arith.constant 1 : i32
    %7 = arith.subi %c1_i32, %3 : i32
    %c0_i32 = arith.constant 0 : i32
    %8 = arith.muli %c0_i32, %7 : i32
    %9 = arith.addi %6, %8 : i32
    %c0_i32_0 = arith.constant 0 : i32
    %c0_i32_1 = arith.constant 0 : i32
    %c0_i32_2 = arith.constant 0 : i32
    return %5, %9, %c0_i32_0, %c0_i32_1 : i32, i32, i32, i32
  }
  func.func @transform_5(%arg0: i32, %arg1: i32, %arg2: i32, %arg3: memref<4xi32, #tpu.memory_space<smem>>, %arg4: memref<4xi32, #tpu.memory_space<smem>>) -> (i32, i32, i32) {
    %c4_i32 = arith.constant 4 : i32
    %0 = arith.muli %arg0, %c4_i32 : i32
    %1 = arith.addi %0, %arg1 : i32
    %2 = arith.index_cast %1 : i32 to index
    %3 = memref.load %arg3[%2] : memref<4xi32, #tpu.memory_space<smem>>
    %c0_i32 = arith.constant 0 : i32
    %c0_i32_0 = arith.constant 0 : i32
    %c0_i32_1 = arith.constant 0 : i32
    return %3, %c0_i32, %c0_i32_0 : i32, i32, i32
  }
  func.func @transform_6(%arg0: i32, %arg1: i32, %arg2: i32, %arg3: memref<4xi32, #tpu.memory_space<smem>>, %arg4: memref<4xi32, #tpu.memory_space<smem>>) -> (i32, i32) {
    %c0_i32 = arith.constant 0 : i32
    %c0_i32_0 = arith.constant 0 : i32
    return %arg0, %c0_i32 : i32, i32
  }
}

</mosaic_0001>

<llo_original>
// kernel: llama_moe_forward.1
$region0: #{llama_moe_forward.1}
  #allocation0 [shape = 'u32[]', space=smem, size = 0x4, offset = 0x4, fixed_abs, tag = 'smem constant byte address 0x4 - core index']
  #allocation1 [shape = 'u32[72,128]{1,0:T(1,128)}', space=vmem, size = 0x9000, scoped, tag = 'internal scratch']
  #allocation2 [shape = 'f32[32,1]{1,0:T(8,128)}', space=vmem, size = 0x4000, scoped, tag = 'scratch operand']
  #allocation3 [shape = 's32[1]{0}', space=sflag, size = 0x4, scoped, tag = 'scoped memory for llama_moe_forward.1']
  #allocation4 [shape = 'u8[512]{0}', space=smem, size = 0x200, scoped, tag = 'prefetched SMEM operand 0']
  #allocation5 [shape = 'u8[512]{0}', space=smem, size = 0x200, scoped, tag = 'prefetched SMEM operand 1']
  %s0 = inlined_call_operand.vmem [shape: s32[4], index: 0, kind: input, shape index: {}]
  %s1 = inlined_call_operand.vmem [shape: s32[4], index: 1, kind: input, shape index: {}]
  %s2 = inlined_call_operand.vmem [shape: bf16[32,32], index: 2, kind: input, shape index: {}]
  %s3 = inlined_call_operand.vmem [shape: f32[32,4], index: 3, kind: input, shape index: {}]
  %s4 = inlined_call_operand.vmem [shape: bf16[4,1,32,256], index: 4, kind: input, shape index: {}]
  %s5 = inlined_call_operand.vmem [shape: f32[4,1,1,256], index: 5, kind: input, shape index: {}]
  %s6 = inlined_call_operand.vmem [shape: bf16[4,1,128,32], index: 6, kind: input, shape index: {}]
  %s7 = inlined_call_operand.vmem [shape: f32[4,1,32], index: 7, kind: input, shape index: {}]
  %s8 = inlined_call_operand.hbm [shape: f32[32,32], index: 8, kind: output, shape index: {}]
  %s9 = sld [smem:[#allocation0]]
  $region69: #{llama_moe_forward.1} parent=0
    _
  %s11 = ssub.s32 1, %s9
  %s12 = scalar_select 0, %s11, %s9
  %s14 = sshll.u32 %s0, 4
  %s15 = int_to_ptr.vmem [resolvable:$true] %s14
  %17 = dma.vmem_to_smem %s15, 16, [#allocation4], [#allocation3]
  %s19 = sshll.u32 %s1, 4
  %s20 = int_to_ptr.vmem [resolvable:$true] %s19
  %22 = dma.vmem_to_smem %s20, 16, [#allocation5], [#allocation3]
  %24 = dma.done [#allocation3], 32
  %25 = sfence
  $region1: #{llama_moe_forward.1} parent=0
    #allocation6 [shape = 'u8[16384]{0}', space=vmem, size = 0x4000, scoped, tag = 'output window, operand 0, single buffered']
    #allocation7 [shape = 's32[2]{0}', space=sflag, size = 0x8, scoped, tag = 'scoped memory for llama_moe_forward.1']
    %26 = vsyncpa [#allocation7], 0
    loop: start=0, step=1, limit=6
    $region2: #{llama_moe_forward.1} parent=1 // loop_pre_header
      _
    $region3: #{llama_moe_forward.1} parent=1 // loop_header
      %s28 = sphi 0, %s32
      %p29 = scmp.ge.s32.totalorder %s28, 6
      %s35 = sphi 0, %s54
      %s36 = sphi 0, %s50
      %s37 = sphi 0, %s46
      %s38 = sphi 0, %s35
      %s39 = sphi 0, %s36
      %s40 = sphi 0, %s37
      %s41 = sphi 0, %s38
      %s42 = sphi 0, %s39
      %s43 = sphi 0, %s40
      %s57 = sphi 0, %s59
      %s60 = sphi 0, %s57
      %s61 = sphi 0, %s60
      %s77 = sphi 0, %s61
      %s83 = sphi 0, %s85
      %s86 = sphi 0, %s83
      %s87 = sphi 0, %s86
      %s103 = sphi 0, %s87
      %s121 = sphi 0, %s123
      %s124 = sphi 0, %s121
      %s125 = sphi 0, %s124
      %s141 = sphi 0, %s125
      %s159 = sphi 0, %s161
      %s162 = sphi 0, %s159
      %s163 = sphi 0, %s162
      %s179 = sphi 0, %s163
      %s197 = sphi 0, %s199
      %s200 = sphi 0, %s197
      %s201 = sphi 0, %s200
      %s217 = sphi 0, %s201
      %s229 = sphi 0, %s231
      %s232 = sphi 0, %s229
      %s233 = sphi 0, %s232
      %s249 = sphi 0, %s233
      %s255 = sphi 0, %s257
      %s258 = sphi 0, %s255
      %s259 = sphi 0, %s258
      %s275 = sphi 0, %s259
    $region4: #{llama_moe_forward.1} parent=1 // loop_header_branch
      %31 = sbr.rel (%p29) target = $region8
    $region5: #{llama_moe_forward.1} parent=1 // loop_body
      %s33 = ssub.s32 %s28, 1
      %s34 = ssub.s32 %s28, 2
      %s44 = sadd.s32 1, %s37
      %p45 = scmp.ge.s32.totalorder %s44, 1
      %s46 = scalar_select %p45, 0, %s44
      %s47 = sadd.s32 1, %s36
      %s48 = scalar_select %p45, %s47, %s36
      %p49 = scmp.ge.s32.totalorder %s48, 4
      %s50 = scalar_select %p49, 0, %s48
      %s51 = sadd.s32 1, %s35
      %s52 = scalar_select %p49, %s51, %s35
      %p53 = scmp.ge.s32.totalorder %s52, 1
      %s54 = scalar_select %p53, 0, %s52
      %s55 = ssub.s32 %s35, %s54
      %p56 = scmp.eq.s32.totalorder %s55, 0
      %s58 = sadd.s32 %s57, 1
      %s59 = scalar_select %p56, %s57, %s58
      %p62 = pneg %p56
      %p63 = scmp.eq.s32.totalorder %s28, 3
      %p64 = por %p62, %p63
      %p65 = scmp.ne.s32.totalorder %s57, %s60
      %p66 = scmp.eq.s32.totalorder %s28, 0
      %p67 = por %p65, %p66
      %p68 = scmp.ne.s32.totalorder %s57, %s60
      %p69 = scmp.eq.s32.totalorder %s33, 3
      %p70 = por %p68, %p69
      %p71 = scmp.ne.s32.totalorder %s60, %s61
      %p72 = scmp.eq.s32.totalorder %s33, 0
      %p73 = por %p71, %p72
      %p74 = scmp.ne.s32.totalorder %s60, %s61
      %p75 = scmp.eq.s32.totalorder %s34, 3
      %p76 = por %p74, %p75
      %p78 = scmp.ne.s32.totalorder %s61, %s77
      %p79 = scmp.eq.s32.totalorder %s34, 0
      %p80 = por %p78, %p79
      %s81 = ssub.s32 %s35, %s54
      %p82 = scmp.eq.s32.totalorder %s81, 0
      %s84 = sadd.s32 %s83, 1
      %s85 = scalar_select %p82, %s83, %s84
      %p88 = pneg %p82
      %p89 = scmp.eq.s32.totalorder %s28, 3
      %p90 = por %p88, %p89
      %p91 = scmp.ne.s32.totalorder %s83, %s86
      %p92 = scmp.eq.s32.totalorder %s28, 0
      %p93 = por %p91, %p92
      %p94 = scmp.ne.s32.totalorder %s83, %s86
      %p95 = scmp.eq.s32.totalorder %s33, 3
      %p96 = por %p94, %p95
      %p97 = scmp.ne.s32.totalorder %s86, %s87
      %p98 = scmp.eq.s32.totalorder %s33, 0
      %p99 = por %p97, %p98
      %p100 = scmp.ne.s32.totalorder %s86, %s87
      %p101 = scmp.eq.s32.totalorder %s34, 3
      %p102 = por %p100, %p101
      %p104 = scmp.ne.s32.totalorder %s87, %s103
      %p105 = scmp.eq.s32.totalorder %s34, 0
      %p106 = por %p104, %p105
      %s107 = smul.u32 %s35, 4
      %s108 = sadd.s32 %s107, %s36
      %s109 = sld [smem:[#allocation5 + %s108]]
      %s110 = sld [smem:[#allocation4 + %s108]]
      %s111 = smul.u32 %s37, %s109
      %s112 = smul.u32 %s54, 4
      %s113 = sadd.s32 %s112, %s50
      %s114 = sld [smem:[#allocation5 + %s113]]
      %s115 = sld [smem:[#allocation4 + %s113]]
      %s116 = smul.u32 %s46, %s114
      %s117 = ssub.s32 %s110, %s115
      %s118 = ssub.s32 %s111, %s116
      %s119 = sor.u32 %s117, %s118
      %p120 = scmp.eq.s32.totalorder %s119, 0
      %s122 = sadd.s32 %s121, 1
      %s123 = scalar_select %p120, %s121, %s122
      %p126 = pneg %p120
      %p127 = scmp.eq.s32.totalorder %s28, 3
      %p128 = por %p126, %p127
      %p129 = scmp.ne.s32.totalorder %s121, %s124
      %p130 = scmp.eq.s32.totalorder %s28, 0
      %p131 = por %p129, %p130
      %p132 = scmp.ne.s32.totalorder %s121, %s124
      %p133 = scmp.eq.s32.totalorder %s33, 3
      %p134 = por %p132, %p133
      %p135 = scmp.ne.s32.totalorder %s124, %s125
      %p136 = scmp.eq.s32.totalorder %s33, 0
      %p137 = por %p135, %p136
      %p138 = scmp.ne.s32.totalorder %s124, %s125
      %p139 = scmp.eq.s32.totalorder %s34, 3
      %p140 = por %p138, %p139
      %p142 = scmp.ne.s32.totalorder %s125, %s141
      %p143 = scmp.eq.s32.totalorder %s34, 0
      %p144 = por %p142, %p143
      %s145 = smul.u32 %s35, 4
      %s146 = sadd.s32 %s145, %s36
      %s147 = sld [smem:[#allocation5 + %s146]]
      %s148 = sld [smem:[#allocation4 + %s146]]
      %s149 = smul.u32 %s37, %s147
      %s150 = smul.u32 %s54, 4
      %s151 = sadd.s32 %s150, %s50
      %s152 = sld [smem:[#allocation5 + %s151]]
      %s153 = sld [smem:[#allocation4 + %s151]]
      %s154 = smul.u32 %s46, %s152
      %s155 = ssub.s32 %s148, %s153
      %s156 = ssub.s32 %s149, %s154
      %s157 = sor.u32 %s155, %s156
      %p158 = scmp.eq.s32.totalorder %s157, 0
      %s160 = sadd.s32 %s159, 1
      %s161 = scalar_select %p158, %s159, %s160
      %p164 = pneg %p158
      %p165 = scmp.eq.s32.totalorder %s28, 3
      %p166 = por %p164, %p165
      %p167 = scmp.ne.s32.totalorder %s159, %s162
      %p168 = scmp.eq.s32.totalorder %s28, 0
      %p169 = por %p167, %p168
      %p170 = scmp.ne.s32.totalorder %s159, %s162
      %p171 = scmp.eq.s32.totalorder %s33, 3
      %p172 = por %p170, %p171
      %p173 = scmp.ne.s32.totalorder %s162, %s163
      %p174 = scmp.eq.s32.totalorder %s33, 0
      %p175 = por %p173, %p174
      %p176 = scmp.ne.s32.totalorder %s162, %s163
      %p177 = scmp.eq.s32.totalorder %s34, 3
      %p178 = por %p176, %p177
      %p180 = scmp.ne.s32.totalorder %s163, %s179
      %p181 = scmp.eq.s32.totalorder %s34, 0
      %p182 = por %p180, %p181
      %s183 = smul.u32 %s35, 4
      %s184 = sadd.s32 %s183, %s36
      %s185 = sld [smem:[#allocation5 + %s184]]
      %s186 = sld [smem:[#allocation4 + %s184]]
      %s187 = smul.u32 %s37, %s185
      %s188 = smul.u32 %s54, 4
      %s189 = sadd.s32 %s188, %s50
      %s190 = sld [smem:[#allocation5 + %s189]]
      %s191 = sld [smem:[#allocation4 + %s189]]
      %s192 = smul.u32 %s46, %s190
      %s193 = ssub.s32 %s186, %s191
      %s194 = ssub.s32 %s187, %s192
      %s195 = sor.u32 %s193, %s194
      %p196 = scmp.eq.s32.totalorder %s195, 0
      %s198 = sadd.s32 %s197, 1
      %s199 = scalar_select %p196, %s197, %s198
      %p202 = pneg %p196
      %p203 = scmp.eq.s32.totalorder %s28, 3
      %p204 = por %p202, %p203
      %p205 = scmp.ne.s32.totalorder %s197, %s200
      %p206 = scmp.eq.s32.totalorder %s28, 0
      %p207 = por %p205, %p206
      %p208 = scmp.ne.s32.totalorder %s197, %s200
      %p209 = scmp.eq.s32.totalorder %s33, 3
      %p210 = por %p208, %p209
      %p211 = scmp.ne.s32.totalorder %s200, %s201
      %p212 = scmp.eq.s32.totalorder %s33, 0
      %p213 = por %p211, %p212
      %p214 = scmp.ne.s32.totalorder %s200, %s201
      %p215 = scmp.eq.s32.totalorder %s34, 3
      %p216 = por %p214, %p215
      %p218 = scmp.ne.s32.totalorder %s201, %s217
      %p219 = scmp.eq.s32.totalorder %s34, 0
      %p220 = por %p218, %p219
      %s221 = smul.u32 %s35, 4
      %s222 = sadd.s32 %s221, %s36
      %s223 = sld [smem:[#allocation4 + %s222]]
      %s224 = smul.u32 %s54, 4
      %s225 = sadd.s32 %s224, %s50
      %s226 = sld [smem:[#allocation4 + %s225]]
      %s227 = ssub.s32 %s223, %s226
      %p228 = scmp.eq.s32.totalorder %s227, 0
      %s230 = sadd.s32 %s229, 1
      %s231 = scalar_select %p228, %s229, %s230
      %p234 = pneg %p228
      %p235 = scmp.eq.s32.totalorder %s28, 3
      %p236 = por %p234, %p235
      %p237 = scmp.ne.s32.totalorder %s229, %s232
      %p238 = scmp.eq.s32.totalorder %s28, 0
      %p239 = por %p237, %p238
      %p240 = scmp.ne.s32.totalorder %s229, %s232
      %p241 = scmp.eq.s32.totalorder %s33, 3
      %p242 = por %p240, %p241
      %p243 = scmp.ne.s32.totalorder %s232, %s233
      %p244 = scmp.eq.s32.totalorder %s33, 0
      %p245 = por %p243, %p244
      %p246 = scmp.ne.s32.totalorder %s232, %s233
      %p247 = scmp.eq.s32.totalorder %s34, 3
      %p248 = por %p246, %p247
      %p250 = scmp.ne.s32.totalorder %s233, %s249
      %p251 = scmp.eq.s32.totalorder %s34, 0
      %p252 = por %p250, %p251
      %s253 = ssub.s32 %s35, %s54
      %p254 = scmp.eq.s32.totalorder %s253, 0
      %s256 = sadd.s32 %s255, 1
      %s257 = scalar_select %p254, %s255, %s256
      %p260 = pneg %p254
      %p261 = scmp.eq.s32.totalorder %s28, 3
      %p262 = por %p260, %p261
      %p263 = scmp.ne.s32.totalorder %s255, %s258
      %p264 = scmp.eq.s32.totalorder %s28, 0
      %p265 = por %p263, %p264
      %p266 = scmp.ne.s32.totalorder %s255, %s258
      %p267 = scmp.eq.s32.totalorder %s33, 3
      %p268 = por %p266, %p267
      %p269 = scmp.ne.s32.totalorder %s258, %s259
      %p270 = scmp.eq.s32.totalorder %s33, 0
      %p271 = por %p269, %p270
      %p272 = scmp.ne.s32.totalorder %s258, %s259
      %p273 = scmp.eq.s32.totalorder %s34, 3
      %p274 = por %p272, %p273
      %p276 = scmp.ne.s32.totalorder %s259, %s275
      %p277 = scmp.eq.s32.totalorder %s34, 0
      %p278 = por %p276, %p277
      %p279 = scmp.le.s32.totalorder 1, %s28
      %p280 = scmp.lt.s32.totalorder %s28, 5
      %p281 = pnand %p279, %p280
      %p282 = pneg %p281
      // Predicated region
      $region9: #{llama_moe_forward.1} parent=5 // pred_check
        _
      $region10: #{llama_moe_forward.1} parent=5 // pred_check_branch
        %284 = sbr.rel (%p281) target = $region12
      $region11: #{llama_moe_forward.1} parent=5 // pred_region
        %s285 = ssub.s32 %s28, 1
        // Predicated region
        $region13: #{llama_moe_forward.1} parent=11 // pred_check
          %p286 = pneg %p73
        $region14: #{llama_moe_forward.1} parent=11 // pred_check_branch
          %288 = sbr.rel (%p286) target = $region16
        $region15: #{llama_moe_forward.1} parent=11 // pred_region
          %s289 = smul.u32 4, %s38
          %p290 = scmp.lt.s32.totalorder %s289, 3
          %s291 = scalar_select %p290, %s289, 3
          %s292 = smul.addr %s291, 4
          %s293 = scalar_lea.vmem %s2, %s292
          %s294 = smul.u32 4, %s38
        $region16: #{llama_moe_forward.1} parent=11 // pred_fallthru
          _
        // Predicated region
        $region17: #{llama_moe_forward.1} parent=11 // pred_check
          %p295 = pneg %p99
        $region18: #{llama_moe_forward.1} parent=11 // pred_check_branch
          %297 = sbr.rel (%p295) target = $region20
        $region19: #{llama_moe_forward.1} parent=11 // pred_region
          %s298 = smul.u32 4, %s38
          %p299 = scmp.lt.s32.totalorder %s298, 3
          %s300 = scalar_select %p299, %s298, 3
          %s301 = smul.addr %s300, 8
          %s302 = scalar_lea.vmem %s3, %s301
          %s303 = smul.u32 4, %s38
        $region20: #{llama_moe_forward.1} parent=11 // pred_fallthru
          _
      $region12: #{llama_moe_forward.1} parent=5 // pred_fallthru
        _
      %p304 = scmp.lt.s32.totalorder %s28, 4
      // Predicated region
      $region21: #{llama_moe_forward.1} parent=5 // pred_check
        %p305 = pneg %p304
      $region22: #{llama_moe_forward.1} parent=5 // pred_check_branch
        %307 = sbr.rel (%p305) target = $region24
      $region23: #{llama_moe_forward.1} parent=5 // pred_region
        // Predicated region
        $region25: #{llama_moe_forward.1} parent=23 // pred_check
          %p308 = pneg %p131
        $region26: #{llama_moe_forward.1} parent=23 // pred_check_branch
          %310 = sbr.rel (%p308) target = $region28
        $region27: #{llama_moe_forward.1} parent=23 // pred_region
          %s311 = smul.u32 %s35, 4
          %s312 = sadd.s32 %s311, %s36
          %s313 = sld [smem:[#allocation5 + %s312]]
          %s314 = sld [smem:[#allocation4 + %s312]]
          %s315 = smul.u32 %s37, %s313
          %p316 = scmp.lt.s32.totalorder %s314, 3
          %s317 = scalar_select %p316, %s314, 3
          %p318 = scmp.lt.s32.totalorder %s315, 0
          %s319 = scalar_select %p318, %s315, 0
          %s320 = smul.addr %s319, 8
          %s321 = smul.addr %s317, 8
          %s322 = sadd.s32 %s320, %s321
          %s323 = smul.addr %s322, 4
          %s324 = scalar_lea.vmem %s4, %s323
          %s325 = smul.u32 %s35, 4
          %s326 = sadd.s32 %s325, %s36
          %s327 = sld [smem:[#allocation5 + %s326]]
          %s328 = sld [smem:[#allocation4 + %s326]]
          %s329 = smul.u32 %s37, %s327
        $region28: #{llama_moe_forward.1} parent=23 // pred_fallthru
          _
        // Predicated region
        $region29: #{llama_moe_forward.1} parent=23 // pred_check
          %p330 = pneg %p169
        $region30: #{llama_moe_forward.1} parent=23 // pred_check_branch
          %332 = sbr.rel (%p330) target = $region32
        $region31: #{llama_moe_forward.1} parent=23 // pred_region
          %s333 = smul.u32 %s35, 4
          %s334 = sadd.s32 %s333, %s36
          %s335 = sld [smem:[#allocation5 + %s334]]
          %s336 = sld [smem:[#allocation4 + %s334]]
          %s337 = smul.u32 %s37, %s335
          %p338 = scmp.lt.s32.totalorder %s336, 3
          %s339 = scalar_select %p338, %s336, 3
          %p340 = scmp.lt.s32.totalorder %s337, 0
          %s341 = scalar_select %p340, %s337, 0
          %s342 = smul.addr %s341, 2
          %s343 = smul.addr %s339, 2
          %s344 = sadd.s32 %s342, %s343
          %s345 = scalar_lea.vmem %s5, %s344
          %s346 = smul.u32 %s35, 4
          %s347 = sadd.s32 %s346, %s36
          %s348 = sld [smem:[#allocation5 + %s347]]
          %s349 = sld [smem:[#allocation4 + %s347]]
          %s350 = smul.u32 %s37, %s348
        $region32: #{llama_moe_forward.1} parent=23 // pred_fallthru
          _
        // Predicated region
        $region33: #{llama_moe_forward.1} parent=23 // pred_check
          %p351 = pneg %p207
        $region34: #{llama_moe_forward.1} parent=23 // pred_check_branch
          %353 = sbr.rel (%p351) target = $region36
        $region35: #{llama_moe_forward.1} parent=23 // pred_region
          %s354 = smul.u32 %s35, 4
          %s355 = sadd.s32 %s354, %s36
          %s356 = sld [smem:[#allocation5 + %s355]]
          %s357 = sld [smem:[#allocation4 + %s355]]
          %s358 = smul.u32 %s37, %s356
          %p359 = scmp.lt.s32.totalorder %s357, 3
          %s360 = scalar_select %p359, %s357, 3
          %p361 = scmp.lt.s32.totalorder %s358, 0
          %s362 = scalar_select %p361, %s358, 0
          %s363 = smul.addr %s362, 16
          %s364 = smul.addr %s360, 16
          %s365 = sadd.s32 %s363, %s364
          %s366 = smul.addr %s365, 4
          %s367 = scalar_lea.vmem %s6, %s366
          %s368 = smul.u32 %s35, 4
          %s369 = sadd.s32 %s368, %s36
          %s370 = sld [smem:[#allocation5 + %s369]]
          %s371 = sld [smem:[#allocation4 + %s369]]
          %s372 = smul.u32 %s37, %s370
        $region36: #{llama_moe_forward.1} parent=23 // pred_fallthru
          _
        // Predicated region
        $region37: #{llama_moe_forward.1} parent=23 // pred_check
          %p373 = pneg %p239
        $region38: #{llama_moe_forward.1} parent=23 // pred_check_branch
          %375 = sbr.rel (%p373) target = $region40
        $region39: #{llama_moe_forward.1} parent=23 // pred_region
          %s376 = smul.u32 %s35, 4
          %s377 = sadd.s32 %s376, %s36
          %s378 = sld [smem:[#allocation4 + %s377]]
          %p379 = scmp.lt.s32.totalorder %s378, 3
          %s380 = scalar_select %p379, %s378, 3
          %s381 = scalar_lea.vmem %s7, %s380
          %s382 = smul.u32 %s35, 4
          %s383 = sadd.s32 %s382, %s36
          %s384 = sld [smem:[#allocation4 + %s383]]
        $region40: #{llama_moe_forward.1} parent=23 // pred_fallthru
          _
      $region24: #{llama_moe_forward.1} parent=5 // pred_fallthru
        _
      %p385 = scmp.le.s32.totalorder 1, %s28
      %p386 = scmp.lt.s32.totalorder %s28, 5
      %p387 = pnand %p385, %p386
      %p388 = pneg %p387
      // Predicated region
      $region41: #{llama_moe_forward.1} parent=5 // pred_check
        _
      $region42: #{llama_moe_forward.1} parent=5 // pred_check_branch
        %390 = sbr.rel (%p387) target = $region44
      $region43: #{llama_moe_forward.1} parent=5 // pred_region
        %s391 = ssub.s32 %s28, 1
        %s392 = smul.u32 4, %s38
        %p393 = scmp.lt.s32.totalorder %s392, 3
        %s394 = scalar_select %p393, %s392, 3
        %s395 = smul.addr %s394, 4
        %s396 = scalar_lea.vmem %s2, %s395
        %p397 = pneg %p73
        %p398 = pneg %p70
        %s399 = smul.u32 4, %s38
        %p400 = scmp.lt.s32.totalorder %s399, 3
        %s401 = scalar_select %p400, %s399, 3
        %s402 = smul.addr %s401, 8
        %s403 = scalar_lea.vmem %s3, %s402
        %p404 = pneg %p99
        %p405 = pneg %p96
        %s406 = smul.u32 %s38, 4
        %s407 = sadd.s32 %s406, %s39
        %s408 = sld [smem:[#allocation5 + %s407]]
        %s409 = sld [smem:[#allocation4 + %s407]]
        %s410 = smul.u32 %s40, %s408
        %p411 = scmp.lt.s32.totalorder %s409, 3
        %s412 = scalar_select %p411, %s409, 3
        %p413 = scmp.lt.s32.totalorder %s410, 0
        %s414 = scalar_select %p413, %s410, 0
        %s415 = smul.addr %s414, 8
        %s416 = smul.addr %s412, 8
        %s417 = sadd.s32 %s415, %s416
        %s418 = smul.addr %s417, 4
        %s419 = scalar_lea.vmem %s4, %s418
        %p420 = pneg %p137
        %p421 = pneg %p134
        %s422 = smul.u32 %s38, 4
        %s423 = sadd.s32 %s422, %s39
        %s424 = sld [smem:[#allocation5 + %s423]]
        %s425 = sld [smem:[#allocation4 + %s423]]
        %s426 = smul.u32 %s40, %s424
        %p427 = scmp.lt.s32.totalorder %s425, 3
        %s428 = scalar_select %p427, %s425, 3
        %p429 = scmp.lt.s32.totalorder %s426, 0
        %s430 = scalar_select %p429, %s426, 0
        %s431 = smul.addr %s430, 2
        %s432 = smul.addr %s428, 2
        %s433 = sadd.s32 %s431, %s432
        %s434 = scalar_lea.vmem %s5, %s433
        %p435 = pneg %p175
        %p436 = pneg %p172
        %s437 = smul.u32 %s38, 4
        %s438 = sadd.s32 %s437, %s39
        %s439 = sld [smem:[#allocation5 + %s438]]
        %s440 = sld [smem:[#allocation4 + %s438]]
        %s441 = smul.u32 %s40, %s439
        %p442 = scmp.lt.s32.totalorder %s440, 3
        %s443 = scalar_select %p442, %s440, 3
        %p444 = scmp.lt.s32.totalorder %s441, 0
        %s445 = scalar_select %p444, %s441, 0
        %s446 = smul.addr %s445, 16
        %s447 = smul.addr %s443, 16
        %s448 = sadd.s32 %s446, %s447
        %s449 = smul.addr %s448, 4
        %s450 = scalar_lea.vmem %s6, %s449
        %p451 = pneg %p213
        %p452 = pneg %p210
        %s453 = smul.u32 %s38, 4
        %s454 = sadd.s32 %s453, %s39
        %s455 = sld [smem:[#allocation4 + %s454]]
        %p456 = scmp.lt.s32.totalorder %s455, 3
        %s457 = scalar_select %p456, %s455, 3
        %s458 = scalar_lea.vmem %s7, %s457
        %p459 = pneg %p245
        %p460 = pneg %p242
        %p461 = pneg %p271
        %p462 = pneg %p268
        %s463 = smul.u32 4, %s38
        %p464 = scmp.lt.s32.totalorder %s463, 3
        %s465 = scalar_select %p464, %s463, 3
        %s466 = smul.addr %s465, 4
        %s467 = scalar_lea.vmem %s2, %s466
        %s468 = smul.u32 4, %s38
        %s469 = smul.u32 4, %s38
        %p470 = scmp.lt.s32.totalorder %s469, 3
        %s471 = scalar_select %p470, %s469, 3
        %s472 = smul.addr %s471, 8
        %s473 = scalar_lea.vmem %s3, %s472
        %s474 = smul.u32 4, %s38
        %s475 = smul.u32 %s38, 4
        %s476 = sadd.s32 %s475, %s39
        %s477 = sld [smem:[#allocation5 + %s476]]
        %s478 = sld [smem:[#allocation4 + %s476]]
        %s479 = smul.u32 %s40, %s477
        %p480 = scmp.lt.s32.totalorder %s478, 3
        %s481 = scalar_select %p480, %s478, 3
        %p482 = scmp.lt.s32.totalorder %s479, 0
        %s483 = scalar_select %p482, %s479, 0
        %s484 = smul.addr %s483, 8
        %s485 = smul.addr %s481, 8
        %s486 = sadd.s32 %s484, %s485
        %s487 = smul.addr %s486, 4
        %s488 = scalar_lea.vmem %s4, %s487
        %s489 = smul.u32 %s38, 4
        %s490 = sadd.s32 %s489, %s39
        %s491 = sld [smem:[#allocation5 + %s490]]
        %s492 = sld [smem:[#allocation4 + %s490]]
        %s493 = smul.u32 %s40, %s491
        %s494 = smul.u32 %s38, 4
        %s495 = sadd.s32 %s494, %s39
        %s496 = sld [smem:[#allocation5 + %s495]]
        %s497 = sld [smem:[#allocation4 + %s495]]
        %s498 = smul.u32 %s40, %s496
        %p499 = scmp.lt.s32.totalorder %s497, 3
        %s500 = scalar_select %p499, %s497, 3
        %p501 = scmp.lt.s32.totalorder %s498, 0
        %s502 = scalar_select %p501, %s498, 0
        %s503 = smul.addr %s502, 2
        %s504 = smul.addr %s500, 2
        %s505 = sadd.s32 %s503, %s504
        %s506 = scalar_lea.vmem %s5, %s505
        %s507 = smul.u32 %s38, 4
        %s508 = sadd.s32 %s507, %s39
        %s509 = sld [smem:[#allocation5 + %s508]]
        %s510 = sld [smem:[#allocation4 + %s508]]
        %s511 = smul.u32 %s40, %s509
        %s512 = smul.u32 %s38, 4
        %s513 = sadd.s32 %s512, %s39
        %s514 = sld [smem:[#allocation5 + %s513]]
        %s515 = sld [smem:[#allocation4 + %s513]]
        %s516 = smul.u32 %s40, %s514
        %p517 = scmp.lt.s32.totalorder %s515, 3
        %s518 = scalar_select %p517, %s515, 3
        %p519 = scmp.lt.s32.totalorder %s516, 0
        %s520 = scalar_select %p519, %s516, 0
        %s521 = smul.addr %s520, 16
        %s522 = smul.addr %s518, 16
        %s523 = sadd.s32 %s521, %s522
        %s524 = smul.addr %s523, 4
        %s525 = scalar_lea.vmem %s6, %s524
        %s526 = smul.u32 %s38, 4
        %s527 = sadd.s32 %s526, %s39
        %s528 = sld [smem:[#allocation5 + %s527]]
        %s529 = sld [smem:[#allocation4 + %s527]]
        %s530 = smul.u32 %s40, %s528
        %s531 = smul.u32 %s38, 4
        %s532 = sadd.s32 %s531, %s39
        %s533 = sld [smem:[#allocation4 + %s532]]
        %p534 = scmp.lt.s32.totalorder %s533, 3
        %s535 = scalar_select %p534, %s533, 3
        %s536 = scalar_lea.vmem %s7, %s535
        %s537 = smul.u32 %s38, 4
        %s538 = sadd.s32 %s537, %s39
        %s539 = sld [smem:[#allocation4 + %s538]]
        %s540 = smul.u32 4, %s38
        %s542 = smul.u32 %s38, 4
        %s543 = sadd.s32 %s542, %s39
        %p544 = scmp.eq.s32.totalorder %s39, 0
        %p545 = scmp.eq.s32.totalorder %s40, 0
        %p546 = pnand %p544, %p545
        %p547 = pneg %p546
        // Predicated region
        $region45: #{llama_moe_forward.1} parent=43 // pred_check
          _
        $region46: #{llama_moe_forward.1} parent=43 // pred_check_branch
          %549 = sbr.rel (%p546) target = $region48
        $region47: #{llama_moe_forward.1} parent=43 // pred_region
          %vm550 = vcmask 261120
          %551 = vst.msk [vmem:[#allocation6] sm:$0xff] %vm550, 0.0
          %552 = vst.msk [vmem:[#allocation6 + $0x8] sm:$0xff] %vm550, 0.0
          %553 = vst.msk [vmem:[#allocation6 + $0x10] sm:$0xff] %vm550, 0.0
          %554 = vst.msk [vmem:[#allocation6 + $0x18] sm:$0xff] %vm550, 0.0
        $region48: #{llama_moe_forward.1} parent=43 // pred_fallthru
          _
        %s555 = sld [smem:[#allocation5 + %s543]]
        %p556 = scmp.ne.s32.totalorder %s555, 0
        // Predicated region
        $region49: #{llama_moe_forward.1} parent=43 // pred_check
          %p557 = pneg %p556
        $region50: #{llama_moe_forward.1} parent=43 // pred_check_branch
          %559 = sbr.rel (%p557) target = $region52
        $region51: #{llama_moe_forward.1} parent=43 // pred_region
          // Predicated region
          $region53: #{llama_moe_forward.1} parent=51 // pred_check
            %p560 = pneg %p545
          $region54: #{llama_moe_forward.1} parent=51 // pred_check_branch
            %562 = sbr.rel (%p560) target = $region56
          $region55: #{llama_moe_forward.1} parent=51 // pred_region
            %s563 = sld [smem:[#allocation4 + %s543]]
            %v564 = vlaneseq
            %v565 = vand.u32 %v564, 127
            %v566 = vstv %s563
            %vm567 = vcmp.eq.s32.totalorder %v565, %v566
            %v568 = vld [vmem:[%s473] sm:$0xff]
            %v569 = vld [vmem:[%s473 + $0x8] sm:$0xff]
            %v570 = vld [vmem:[%s473 + $0x10] sm:$0xff]
            %v571 = vld [vmem:[%s473 + $0x18] sm:$0xff]
            %v572 = vsel %vm567, %v568, 0.0
            %v573 = vsel %vm567, %v569, 0.0
            %v574 = vsel %vm567, %v570, 0.0
            %v575 = vsel %vm567, %v571, 0.0
            %vm576 = vcmask 31744
            %v577 = vsel %vm576, %v572, 0.0
            %578 = vadd.xlane.f32.xlu0 %v577
            %v579 = vpop.xlane.xlu0 %578
            %v580 = vsel %vm576, %v573, 0.0
            %581 = vadd.xlane.f32.xlu0 %v580
            %v582 = vpop.xlane.xlu0 %581
            %v583 = vsel %vm576, %v574, 0.0
            %584 = vadd.xlane.f32.xlu0 %v583
            %v585 = vpop.xlane.xlu0 %584
            %v586 = vsel %vm576, %v575, 0.0
            %587 = vadd.xlane.f32.xlu0 %v586
            %v588 = vpop.xlane.xlu0 %587
            %vm589 = vcmask 7168
            %590 = vst.msk [vmem:[#allocation2] sm:$0xff] %vm589, %v579
            %591 = vst.msk [vmem:[#allocation2 + $0x8] sm:$0xff] %vm589, %v582
            %592 = vst.msk [vmem:[#allocation2 + $0x10] sm:$0xff] %vm589, %v585
            %593 = vst.msk [vmem:[#allocation2 + $0x18] sm:$0xff] %vm589, %v588
          $region56: #{llama_moe_forward.1} parent=51 // pred_fallthru
            _
          %v594 = vld [vmem:[%s467] sm:$0xf]
          %v595 = vld [vmem:[%s467 + $0x4] sm:$0xf]
          %v596 = vld [vmem:[%s467 + $0x8] sm:$0xf]
          %v597 = vld [vmem:[%s467 + $0xc] sm:$0xf]
          %v598 = vld [vmem:[%s488] sm:$0xff]
          %v599 = vld [vmem:[%s488 + $0x8] sm:$0xff]
          %v600 = vld [vmem:[%s488 + $0x10] sm:$0xff]
          %v601 = vld [vmem:[%s488 + $0x18] sm:$0xff]
          %v602 = vld [vmem:[%s506] sm:$0x3]
          %v604 = vperm.slane %v602, 0
          %v605 = vperm.slane %v602, 1
          %v612 = vunpack.c.l.b16 %v594
          %v613 = vunpack.c.l.b16 %v595
          %v614 = vunpack.c.l.b16 %v596
          %v615 = vunpack.c.l.b16 %v597
          %v616 = vpack.c.b16 %v613, %v612
          %v617 = vpack.c.b16 %v615, %v614
          %v622 = vunpack.c.l.b16 %v598
          %v623 = vunpack.c.h.b16 %v598
          %v624 = vunpack.c.l.b16 %v599
          %v625 = vunpack.c.h.b16 %v599
          %v626 = vunpack.c.l.b16 %v600
          %v627 = vunpack.c.h.b16 %v600
          %v628 = vunpack.c.l.b16 %v601
          %v629 = vunpack.c.h.b16 %v601
          %v630 = vpack.c.b16 %v624, %v622
          %v631 = vpack.c.b16 %v625, %v623
          %v632 = vpack.c.b16 %v628, %v626
          %v633 = vpack.c.b16 %v629, %v627
          %vm638 = vcmask 261120
          %v640 = vsel %vm638, %v616, 0
          %v643 = vsel %vm638, %v617, 0
          %645 = vmatpush.bf16.msra.mxu0 0
          %646 = vmatpush.bf16.msra.mxu0 0
          %647 = vmatpush.bf16.msra.mxu0 0
          %648 = vmatpush.bf16.msra.mxu0 0
          %649 = vmatpush.bf16.msra.mxu0 0
          %650 = vmatpush.bf16.msra.mxu0 0
          %651 = vmatpush.bf16.msra.mxu0 %v632
          %652 = vmatpush.bf16.msra.mxu0 %v630
          %653 = vmatmul.bf16.gmra.mxu0 %v640
          %v654 = vpop.f32.mrf.mxu0
          %v655 = vadd.f32 %v604, %v654
          %v656 = vpop.f32.mrf.mxu0
          %v657 = vadd.f32 %v604, %v656
          %658 = vmatmul.bf16.gmra.mxu0 %v643
          %v659 = vpop.f32.mrf.mxu0
          %v660 = vadd.f32 %v604, %v659
          %v661 = vpop.f32.mrf.mxu0
          %v662 = vadd.f32 %v604, %v661
          %663 = vdwg.mxu0
          %664 = vmatpush.bf16.msra.mxu0 0
          %665 = vmatpush.bf16.msra.mxu0 0
          %666 = vmatpush.bf16.msra.mxu0 0
          %667 = vmatpush.bf16.msra.mxu0 0
          %668 = vmatpush.bf16.msra.mxu0 0
          %669 = vmatpush.bf16.msra.mxu0 0
          %670 = vmatpush.bf16.msra.mxu0 %v633
          %671 = vmatpush.bf16.msra.mxu0 %v631
          %672 = vmatmul.bf16.gmra.mxu0 %v640
          %v673 = vpop.f32.mrf.mxu0
          %v674 = vadd.f32 %v605, %v673
          %v675 = vpop.f32.mrf.mxu0
          %v676 = vadd.f32 %v605, %v675
          %677 = vmatmul.bf16.gmra.mxu0 %v643
          %v678 = vpop.f32.mrf.mxu0
          %v679 = vadd.f32 %v605, %v678
          %v680 = vpop.f32.mrf.mxu0
          %v681 = vadd.f32 %v605, %v680
          %682 = vdwg.mxu0
          %v683 = vxor.u32 %v655, 2147483648
          %v684 = vxor.u32 %v657, 2147483648
          %v685 = vxor.u32 %v660, 2147483648
          %v686 = vxor.u32 %v662, 2147483648
          %v687 = vmul.f32 %v683, 1.442695
          %v688 = vpow.pop %v687
          %v689 = vmul.f32 %v684, 1.442695
          %v690 = vpow.pop %v689
          %v691 = vmul.f32 %v685, 1.442695
          %v692 = vpow.pop %v691
          %v693 = vmul.f32 %v686, 1.442695
          %v694 = vpow.pop %v693
          %v695 = vadd.f32 %v688, 1.0
          %v696 = vadd.f32 %v690, 1.0
          %v697 = vadd.f32 %v692, 1.0
          %v698 = vadd.f32 %v694, 1.0
          %v699 = vrcp.pop %v695
          %v700 = vmul.f32 %v695, %v699
          %v701 = vsub.f32 1.0, %v700
          %v702 = vmul.f32 %v699, %v701
          %v703 = vadd.f32 %v699, %v702
          %vm704 = vweird.f32 %v695
          %vm705 = vweird.f32 %v699
          %vm706 = vmor %vm704, %vm705
          %v707 = vsel %vm706, %v699, %v703
          %v708 = vand.u32 2147483647, %v695
          %vm709 = vcmp.eq.f32.partialorder %v708, 8.507059e+37
          %v710 = vand.u32 %v695, 2147483648
          %v711 = vor.u32 1.1754944e-38, %v710
          %v712 = vsel %vm709, %v711, %v707
          %v713 = vmul.f32 1.0, %v712
          %v714 = vrcp.pop %v696
          %v715 = vmul.f32 %v696, %v714
          %v716 = vsub.f32 1.0, %v715
          %v717 = vmul.f32 %v714, %v716
          %v718 = vadd.f32 %v714, %v717
          %vm719 = vweird.f32 %v696
          %vm720 = vweird.f32 %v714
          %vm721 = vmor %vm719, %vm720
          %v722 = vsel %vm721, %v714, %v718
          %v723 = vand.u32 2147483647, %v696
          %vm724 = vcmp.eq.f32.partialorder %v723, 8.507059e+37
          %v725 = vand.u32 %v696, 2147483648
          %v726 = vor.u32 1.1754944e-38, %v725
          %v727 = vsel %vm724, %v726, %v722
          %v728 = vmul.f32 1.0, %v727
          %v729 = vrcp.pop %v697
          %v730 = vmul.f32 %v697, %v729
          %v731 = vsub.f32 1.0, %v730
          %v732 = vmul.f32 %v729, %v731
          %v733 = vadd.f32 %v729, %v732
          %vm734 = vweird.f32 %v697
          %vm735 = vweird.f32 %v729
          %vm736 = vmor %vm734, %vm735
          %v737 = vsel %vm736, %v729, %v733
          %v738 = vand.u32 2147483647, %v697
          %vm739 = vcmp.eq.f32.partialorder %v738, 8.507059e+37
          %v740 = vand.u32 %v697, 2147483648
          %v741 = vor.u32 1.1754944e-38, %v740
          %v742 = vsel %vm739, %v741, %v737
          %v743 = vmul.f32 1.0, %v742
          %v744 = vrcp.pop %v698
          %v745 = vmul.f32 %v698, %v744
          %v746 = vsub.f32 1.0, %v745
          %v747 = vmul.f32 %v744, %v746
          %v748 = vadd.f32 %v744, %v747
          %vm749 = vweird.f32 %v698
          %vm750 = vweird.f32 %v744
          %vm751 = vmor %vm749, %vm750
          %v752 = vsel %vm751, %v744, %v748
          %v753 = vand.u32 2147483647, %v698
          %vm754 = vcmp.eq.f32.partialorder %v753, 8.507059e+37
          %v755 = vand.u32 %v698, 2147483648
          %v756 = vor.u32 1.1754944e-38, %v755
          %v757 = vsel %vm754, %v756, %v752
          %v758 = vmul.f32 1.0, %v757
          %v759 = vmul.f32 %v655, %v713
          %v760 = vmul.f32 %v657, %v728
          %v761 = vmul.f32 %v660, %v743
          %v762 = vmul.f32 %v662, %v758
          %v763 = vmul.f32 %v759, %v674
          %v764 = vmul.f32 %v760, %v676
          %v765 = vmul.f32 %v761, %v679
          %v766 = vmul.f32 %v762, %v681
          %v767 = vpack.c.bf16 %v764, %v763
          %v768 = vpack.c.bf16 %v766, %v765
          %v769 = vld [vmem:[%s525] sm:$0xf]
          %v770 = vld [vmem:[%s525 + $0x4] sm:$0xf]
          %v771 = vld [vmem:[%s525 + $0x8] sm:$0xf]
          %v772 = vld [vmem:[%s525 + $0xc] sm:$0xf]
          %v773 = vld [vmem:[%s525 + $0x10] sm:$0xf]
          %v774 = vld [vmem:[%s525 + $0x14] sm:$0xf]
          %v775 = vld [vmem:[%s525 + $0x18] sm:$0xf]
          %v776 = vld [vmem:[%s525 + $0x1c] sm:$0xf]
          %v777 = vld [vmem:[%s525 + $0x20] sm:$0xf]
          %v778 = vld [vmem:[%s525 + $0x24] sm:$0xf]
          %v779 = vld [vmem:[%s525 + $0x28] sm:$0xf]
          %v780 = vld [vmem:[%s525 + $0x2c] sm:$0xf]
          %v781 = vld [vmem:[%s525 + $0x30] sm:$0xf]
          %v782 = vld [vmem:[%s525 + $0x34] sm:$0xf]
          %v783 = vld [vmem:[%s525 + $0x38] sm:$0xf]
          %v784 = vld [vmem:[%s525 + $0x3c] sm:$0xf]
          %s785 = scalar_select %p545, 1.0, 0.0
          %v786 = vld [vmem:[#allocation6] sm:$0xff]
          %v787 = vld [vmem:[#allocation6 + $0x8] sm:$0xff]
          %v788 = vld [vmem:[#allocation6 + $0x10] sm:$0xff]
          %v789 = vld [vmem:[#allocation6 + $0x18] sm:$0xff]
          %v790 = vld [vmem:[#allocation2] sm:$0xff]
          %v791 = vld [vmem:[#allocation2 + $0x8] sm:$0xff]
          %v792 = vld [vmem:[#allocation2 + $0x10] sm:$0xff]
          %v793 = vld [vmem:[#allocation2 + $0x18] sm:$0xff]
          %v794 = vld [vmem:[%s536] sm:$0x1]
          %v795 = vstv %s785
          %v796 = vmul.f32 %v795, %v794
          %v798 = vperm.slane %v796, 0
          %v816 = vunpack.c.l.b16 %v769
          %v817 = vunpack.c.l.b16 %v770
          %v818 = vunpack.c.l.b16 %v771
          %v819 = vunpack.c.l.b16 %v772
          %v820 = vunpack.c.l.b16 %v773
          %v821 = vunpack.c.l.b16 %v774
          %v822 = vunpack.c.l.b16 %v775
          %v823 = vunpack.c.l.b16 %v776
          %v824 = vunpack.c.l.b16 %v777
          %v825 = vunpack.c.l.b16 %v778
          %v826 = vunpack.c.l.b16 %v779
          %v827 = vunpack.c.l.b16 %v780
          %v828 = vunpack.c.l.b16 %v781
          %v829 = vunpack.c.l.b16 %v782
          %v830 = vunpack.c.l.b16 %v783
          %v831 = vunpack.c.l.b16 %v784
          %v832 = vpack.c.b16 %v817, %v816
          %v833 = vpack.c.b16 %v819, %v818
          %v834 = vpack.c.b16 %v821, %v820
          %v835 = vpack.c.b16 %v823, %v822
          %v836 = vpack.c.b16 %v825, %v824
          %v837 = vpack.c.b16 %v827, %v826
          %v838 = vpack.c.b16 %v829, %v828
          %v839 = vpack.c.b16 %v831, %v830
          %848 = vmatpush.bf16.msra.mxu0 %v839
          %849 = vmatpush.bf16.msra.mxu0 %v838
          %850 = vmatpush.bf16.msra.mxu0 %v837
          %851 = vmatpush.bf16.msra.mxu0 %v836
          %852 = vmatpush.bf16.msra.mxu0 %v835
          %853 = vmatpush.bf16.msra.mxu0 %v834
          %854 = vmatpush.bf16.msra.mxu0 %v833
          %855 = vmatpush.bf16.msra.mxu0 %v832
          %856 = vmatmul.bf16.gmra.mxu0 %v767
          %v857 = vpop.f32.mrf.mxu0
          %v858 = vadd.f32 %v798, %v857
          %v859 = vpop.f32.mrf.mxu0
          %v860 = vadd.f32 %v798, %v859
          %861 = vmatmul.bf16.gmra.mxu0 %v768
          %v862 = vpop.f32.mrf.mxu0
          %v863 = vadd.f32 %v798, %v862
          %v864 = vpop.f32.mrf.mxu0
          %v865 = vadd.f32 %v798, %v864
          %866 = vdwg.mxu0
          %868 = vset.pattern.permute.xlu0 0
          %869 = vperm.xlu0 %868, %v790
          %v870 = vpop.permute.xlu0 %869
          %873 = vset.pattern.permute.xlu0 0
          %874 = vperm.xlu0 %873, %v791
          %v875 = vpop.permute.xlu0 %874
          %878 = vset.pattern.permute.xlu0 0
          %879 = vperm.xlu0 %878, %v792
          %v880 = vpop.permute.xlu0 %879
          %883 = vset.pattern.permute.xlu0 0
          %884 = vperm.xlu0 %883, %v793
          %v885 = vpop.permute.xlu0 %884
          %v887 = vmul.f32 %v870, %v858
          %v888 = vmul.f32 %v875, %v860
          %v889 = vmul.f32 %v880, %v863
          %v890 = vmul.f32 %v885, %v865
          %v891 = vadd.f32 %v786, %v887
          %v892 = vadd.f32 %v787, %v888
          %v893 = vadd.f32 %v788, %v889
          %v894 = vadd.f32 %v789, %v890
          %895 = vst.msk [vmem:[#allocation6] sm:$0xff] %vm638, %v891
          %896 = vst.msk [vmem:[#allocation6 + $0x8] sm:$0xff] %vm638, %v892
          %897 = vst.msk [vmem:[#allocation6 + $0x10] sm:$0xff] %vm638, %v893
          %898 = vst.msk [vmem:[#allocation6 + $0x18] sm:$0xff] %vm638, %v894
        $region52: #{llama_moe_forward.1} parent=43 // pred_fallthru
          _
        // Predicated region
        $region57: #{llama_moe_forward.1} parent=43 // pred_check
          %p899 = pneg %p268
        $region58: #{llama_moe_forward.1} parent=43 // pred_check_branch
          %901 = sbr.rel (%p899) target = $region60
        $region59: #{llama_moe_forward.1} parent=43 // pred_region
          %s902 = smul.u32 4, %s38
          %904 = vsyncadd [#allocation7], 0
          %s905 = smul.addr %s902, 8
          %s906 = scalar_lea.hbm %s8, %s905
          %s907 = sshll.u32 [#allocation6], 4
          %s908 = int_to_ptr.vmem [resolvable:$true] %s907
          %s909 = sshll.u32 %s906, 4
          %s910 = int_to_ptr.hbm [resolvable:$true] %s909
          %915 = dma.vmem_to_hbm [thread:$0]  %s908, 512, %s910, [#allocation7], 128, 128, 8
        $region60: #{llama_moe_forward.1} parent=43 // pred_fallthru
          _
        // Predicated region
        $region61: #{llama_moe_forward.1} parent=43 // pred_check
          %p916 = pneg %p268
        $region62: #{llama_moe_forward.1} parent=43 // pred_check_branch
          %918 = sbr.rel (%p916) target = $region64
        $region63: #{llama_moe_forward.1} parent=43 // pred_region
          %920 = dma.done [#allocation7], 512
        $region64: #{llama_moe_forward.1} parent=43 // pred_fallthru
          _
      $region44: #{llama_moe_forward.1} parent=5 // pred_fallthru
        _
      %p921 = scmp.le.s32.totalorder 2, %s28
      // Predicated region
      $region65: #{llama_moe_forward.1} parent=5 // pred_check
        %p922 = pneg %p921
      $region66: #{llama_moe_forward.1} parent=5 // pred_check_branch
        %924 = sbr.rel (%p922) target = $region68
      $region67: #{llama_moe_forward.1} parent=5 // pred_region
        %s925 = ssub.s32 %s28, 2
      $region68: #{llama_moe_forward.1} parent=5 // pred_fallthru
        _
    $region6: #{llama_moe_forward.1} parent=1 // loop_footer
      %s32 = sadd.s32 1, %s28
    $region7: #{llama_moe_forward.1} parent=1 // loop_footer_branch
      %27 = sbr.rel target = $region3
    $region8: #{llama_moe_forward.1} parent=1 // loop_exit
      _
    %926 = vsyncpa [#allocation7], 1
    %s927 = scalar_lea.sflag [#allocation7], 1
    %928 = vsyncpa %s927, 1

</llo_original>
